<compile_context>
chip_gen: v5e
topology: v5e:2x2
jax: 0.10.0
libtpu: 0.0.40
codegen_flags: <defaults>
</compile_context>

<pallas_src>
import jax
import jax.numpy as jnp
from jax.experimental import pallas as pl
from jax.experimental.pallas import tpu as pltpu

EPS = 1e-5  # nn.InstanceNorm2d default


def _decoderconv1_kernel(xcol_ref, w_ref, o_ref):
    # xcol_ref: (1, K, HW)   im2col'd input for one sample (K = 9*Cin)
    # w_ref   : (Cout, K)    flattened conv weight
    # o_ref   : (1, Cout, HW) output for one sample
    x = xcol_ref[0]                     # (K, HW)   — spatial on lanes
    w = w_ref[...]                      # (Cout, K) — Cout on sublanes

    # Single MXU pass, f32 accumulate: (Cout, K) @ (K, HW) -> (Cout, HW).
    acc = jnp.dot(w, x, preferred_element_type=jnp.float32)

    # (ConvTranspose bias omitted: per-channel constants cancel under the
    #  affine=False InstanceNorm mean subtraction — zero numerical change.)

    # InstanceNorm2d(affine=False): per-channel mean / biased var over spatial.
    mean = jnp.mean(acc, axis=1, keepdims=True)          # (Cout, 1)
    centered = acc - mean
    var = jnp.mean(centered * centered, axis=1, keepdims=True)
    y = centered * jax.lax.rsqrt(var + EPS)

    # ReLU
    y = jnp.maximum(y, 0.0)

    o_ref[0] = y.astype(o_ref.dtype)    # lane-dense (Cout, HW) store


def decoderconv_1_forward(x_nchw, w_transpose, bias):
    """Forward pass matching the PyTorch module.

    Args:
      x_nchw:       (N, Cin, H, W) float32 input (PyTorch layout).
      w_transpose:  (Cin, Cout, 3, 3) float32, nn.ConvTranspose2d weight layout.
      bias:         (Cout,) float32, nn.ConvTranspose2d bias. Unused: it is a
                    mathematical no-op under InstanceNorm2d(affine=False).
    Returns:
      (N, Cout, H, W) float32 output (PyTorch layout).
    """
    del bias  # cancelled exactly by the instance-norm mean subtraction
    N, Cin, H, W = x_nchw.shape
    Cout = w_transpose.shape[1]
    HW = H * W
    K = 9 * Cin

    # ConvTranspose2d(s=1, p=1) == Conv2d(p=1) with spatially flipped kernel
    # and swapped in/out channel axes. Flatten to (Cout, K) with K ordered
    # (dh, dw, ci) to match the im2col ordering below.
    w_conv = jnp.flip(w_transpose, axis=(2, 3))                  # (Cin, Cout, 3, 3)
    w_flat = jnp.transpose(w_conv, (1, 2, 3, 0)).reshape(Cout, K)  # (Cout, dh*dw*Cin)

    # im2col in the wrapper (once): (N, 9*Cin, H*W), K ordered (dh, dw, ci).
    # TODO(synk): at real decoder sizes move the pad + im2col in-kernel
    # (streaming / shifted-tap matmuls) to avoid the 9x HBM blow-up.
    xpad = jnp.pad(x_nchw, ((0, 0), (0, 0), (1, 1), (1, 1)))
    cols = []
    for dh in range(3):
        for dw in range(3):
            cols.append(xpad[:, :, dh:dh + H, dw:dw + W].reshape(N, Cin, HW))
    xcol = jnp.concatenate(cols, axis=1)                         # (N, K, HW)

    out = pl.pallas_call(
        _decoderconv1_kernel,
        out_shape=jax.ShapeDtypeStruct((N, Cout, HW), x_nchw.dtype),
        grid=(N,),
        in_specs=[
            pl.BlockSpec((1, K, HW), lambda n: (n, 0, 0)),
            pl.BlockSpec((Cout, K), lambda n: (0, 0)),
        ],
        out_specs=pl.BlockSpec((1, Cout, HW), lambda n: (n, 0, 0)),
        compiler_params=pltpu.CompilerParams(
            dimension_semantics=("parallel",)),
    )(xcol, w_flat)

    # (N, Cout, H*W) -> (N, Cout, H, W): pure reshape, no transpose needed.
    return out.reshape(N, Cout, H, W)


def _reference_forward(x_nchw, w_transpose, bias):
    """Pure-JAX reference (ConvTranspose + bias + InstanceNorm + ReLU)."""
    w_conv = jnp.transpose(jnp.flip(w_transpose, axis=(2, 3)), (2, 3, 0, 1))
    y = jax.lax.conv_general_dilated(
        x_nchw, w_conv, window_strides=(1, 1), padding="SAME",
        dimension_numbers=("NCHW", "HWIO", "NCHW"))
    y = y + bias.reshape(1, -1, 1, 1)
    mean = jnp.mean(y, axis=(2, 3), keepdims=True)
    var = jnp.mean((y - mean) ** 2, axis=(2, 3), keepdims=True)
    y = (y - mean) / jnp.sqrt(var + EPS)
    return jnp.maximum(y, 0.0)


if __name__ == "__main__":
    in_ch, ou_ch = 4, 8
    N, H, W = 2, 16, 16

    key = jax.random.PRNGKey(0)
    kx, kw, kb = jax.random.split(key, 3)

    x = jax.random.normal(kx, (N, in_ch, H, W), dtype=jnp.float32)
    # ConvTranspose2d weight layout: (in_ch, out_ch, kH, kW); bias: (out_ch,).
    w_t = 0.1 * jax.random.normal(kw, (in_ch, ou_ch, 3, 3), dtype=jnp.float32)
    b = 0.1 * jax.random.normal(kb, (ou_ch,), dtype=jnp.float32)

    out = decoderconv_1_forward(x, w_t, b)
    out = jax.block_until_ready(out)

    ref = _reference_forward(x, w_t, b)
    assert out.shape == (N, ou_ch, H, W)
    assert jnp.allclose(out, ref, atol=1e-4, rtol=1e-4)

    print("KERNEL_OK")
</pallas_src>

<mosaic_0001>
module attributes {stable_mosaic.version = 11 : i64} {
  func.func @_decoderconv1_kernel(%arg0: i32, %arg1: memref<1x36x256xf32, #tpu.memory_space<vmem>>, %arg2: memref<8x36xf32, #tpu.memory_space<vmem>>, %arg3: memref<1x8x256xf32, #tpu.memory_space<vmem>>) attributes {dimension_semantics = [#tpu.dimension_semantics<parallel>], iteration_bounds = array<i64: 2>, scalar_prefetch = 0 : i64, scratch_operands = 0 : i64, tpu.core_type = #tpu.core_type<tc>, window_params = [{transform_indices = @transform_0, window_bounds = array<i64: 1, 36, 256>}, {pipeline_mode = #tpu.pipeline_mode<synchronous>, transform_indices = @transform_1, window_bounds = array<i64: 8, 36>}, {transform_indices = @transform_2, window_bounds = array<i64: 1, 8, 256>}]} {
    %c0 = arith.constant 0 : index
    %c0_0 = arith.constant 0 : index
    %c0_1 = arith.constant 0 : index
    %0 = vector.load %arg1[%c0, %c0_0, %c0_1] : memref<1x36x256xf32, #tpu.memory_space<vmem>>, vector<1x36x256xf32>
    %1 = vector.shape_cast %0 : vector<1x36x256xf32> to vector<36x256xf32>
    %c0_2 = arith.constant 0 : index
    %c0_3 = arith.constant 0 : index
    %2 = vector.load %arg2[%c0_2, %c0_3] : memref<8x36xf32, #tpu.memory_space<vmem>>, vector<8x36xf32>
    %cst = arith.constant dense<0.000000e+00> : vector<8x256xf32>
    %3 = tpu.matmul %2, %1, %cst {dimension_numbers = #tpu.dot_dimension_numbers<[1], [0], [0], [1], [0, 0, 1, 1], [], []>} : vector<8x36xf32>, vector<36x256xf32>, vector<8x256xf32> -> vector<8x256xf32>
    %cst_4 = arith.constant dense<0.000000e+00> : vector<8xf32>
    %4 = vector.multi_reduction <add>, %3, %cst_4 [1] : vector<8x256xf32> to vector<8xf32>
    %5 = vector.shape_cast %4 : vector<8xf32> to vector<8x1xf32>
    %cst_5 = arith.constant 2.560000e+02 : f32
    %6 = vector.broadcast %cst_5 : f32 to vector<8x1xf32>
    %7 = arith.divf %5, %6 : vector<8x1xf32>
    %8 = vector.broadcast %7 : vector<8x1xf32> to vector<8x256xf32>
    %9 = arith.subf %3, %8 : vector<8x256xf32>
    %10 = arith.mulf %9, %9 : vector<8x256xf32>
    %cst_6 = arith.constant dense<0.000000e+00> : vector<8xf32>
    %11 = vector.multi_reduction <add>, %10, %cst_6 [1] : vector<8x256xf32> to vector<8xf32>
    %12 = vector.shape_cast %11 : vector<8xf32> to vector<8x1xf32>
    %cst_7 = arith.constant 2.560000e+02 : f32
    %13 = vector.broadcast %cst_7 : f32 to vector<8x1xf32>
    %14 = arith.divf %12, %13 : vector<8x1xf32>
    %cst_8 = arith.constant 9.99999974E-6 : f32
    %15 = vector.broadcast %cst_8 : f32 to vector<8x1xf32>
    %16 = arith.addf %14, %15 : vector<8x1xf32>
    %17 = math.rsqrt %16 : vector<8x1xf32>
    %18 = vector.broadcast %17 : vector<8x1xf32> to vector<8x256xf32>
    %19 = arith.mulf %9, %18 : vector<8x256xf32>
    %cst_9 = arith.constant 0.000000e+00 : f32
    %20 = vector.broadcast %cst_9 : f32 to vector<8x256xf32>
    %21 = arith.maximumf %19, %20 : vector<8x256xf32>
    %c0_10 = arith.constant 0 : index
    %c0_11 = arith.constant 0 : index
    %c0_12 = arith.constant 0 : index
    %22 = vector.load %arg3[%c0_10, %c0_11, %c0_12] : memref<1x8x256xf32, #tpu.memory_space<vmem>>, vector<1x8x256xf32>
    %23 = vector.shape_cast %22 : vector<1x8x256xf32> to vector<8x256xf32>
    %24 = vector.shape_cast %21 : vector<8x256xf32> to vector<1x8x256xf32>
    tpu.vector_store %arg3[%c0_10, %c0_11, %c0_12], %24 {strides = array<i32>} : memref<1x8x256xf32, #tpu.memory_space<vmem>>, vector<1x8x256xf32>,
    return
  }
  func.func @transform_0(%arg0: i32) -> (i32, i32, i32) {
    %c0_i32 = arith.constant 0 : i32
    %c0_i32_0 = arith.constant 0 : i32
    %c0_i32_1 = arith.constant 0 : i32
    return %arg0, %c0_i32, %c0_i32_0 : i32, i32, i32
  }
  func.func @transform_1(%arg0: i32) -> (i32, i32) {
    %c0_i32 = arith.constant 0 : i32
    %c0_i32_0 = arith.constant 0 : i32
    %c0_i32_1 = arith.constant 0 : i32
    return %c0_i32, %c0_i32_0 : i32, i32
  }
  func.func @transform_2(%arg0: i32) -> (i32, i32, i32) {
    %c0_i32 = arith.constant 0 : i32
    %c0_i32_0 = arith.constant 0 : i32
    %c0_i32_1 = arith.constant 0 : i32
    return %arg0, %c0_i32, %c0_i32_0 : i32, i32, i32
  }
}

</mosaic_0001>

<llo_original>
// kernel: tpu_custom_call.1
$region0: #{tpu_custom_call.1}
  #allocation0 [shape = 'u32[]', space=smem, size = 0x4, offset = 0x4, fixed_abs, tag = 'smem constant byte address 0x4 - core index']
  #allocation1 [shape = 'u32[72,128]{1,0:T(1,128)}', space=vmem, size = 0x9000, scoped, tag = 'internal scratch']
  %s0 = inlined_call_operand.vmem [shape: f32[2,36,256], index: 0, kind: input, shape index: {}]
  %s1 = inlined_call_operand.vmem [shape: f32[8,36], index: 1, kind: input, shape index: {}]
  %s2 = inlined_call_operand.hbm [shape: f32[2,8,256], index: 2, kind: output, shape index: {}]
  %s3 = sld [smem:[#allocation0]]
  $region41: #{tpu_custom_call.1} parent=0
    _
  %s5 = ssub.s32 1, %s3
  %s6 = scalar_select 0, %s5, %s3
  $region1: #{tpu_custom_call.1} parent=0
    #allocation2 [shape = 'u8[16384]{0}', space=vmem, size = 0x4000, scoped, tag = 'output window, operand 0']
    #allocation3 [shape = 's32[2]{0}', space=sflag, size = 0x8, scoped, tag = 'scoped memory for tpu_custom_call.1']
    %7 = vsyncpa [#allocation3], 0
    %s8 = scalar_lea.sflag [#allocation3], 1
    %9 = vsyncpa %s8, 0
    loop: start=0, step=1, limit=4
    $region2: #{tpu_custom_call.1} parent=1 // loop_pre_header
      _
    $region3: #{tpu_custom_call.1} parent=1 // loop_header
      %s11 = sphi 0, %s15
      %p12 = scmp.ge.s32.totalorder %s11, 4
      %s21 = sphi 0, %s23
      %s24 = sphi 0, %s21
      %s25 = sphi 0, %s24
      %s41 = sphi 0, %s25
      %s45 = sphi 0, %s45
      %s47 = sphi 0, %s45
      %s48 = sphi 0, %s47
      %s62 = sphi 0, %s48
      %s68 = sphi 0, %s70
      %s71 = sphi 0, %s68
      %s72 = sphi 0, %s71
      %s88 = sphi 0, %s72
    $region4: #{tpu_custom_call.1} parent=1 // loop_header_branch
      %14 = sbr.rel (%p12) target = $region8
    $region5: #{tpu_custom_call.1} parent=1 // loop_body
      %s16 = ssub.s32 %s11, 1
      %s17 = ssub.s32 %s11, 2
      %s18 = sadd.s32 %s11, 1
      %s19 = ssub.s32 %s11, %s18
      %p20 = scmp.eq.s32.totalorder %s19, 0
      %s22 = sadd.s32 %s21, 1
      %s23 = scalar_select %p20, %s21, %s22
      %p26 = pneg %p20
      %p27 = scmp.eq.s32.totalorder %s11, 1
      %p28 = por %p26, %p27
      %p29 = scmp.ne.s32.totalorder %s21, %s24
      %p30 = scmp.eq.s32.totalorder %s11, 0
      %p31 = por %p29, %p30
      %p32 = scmp.ne.s32.totalorder %s21, %s24
      %p33 = scmp.eq.s32.totalorder %s16, 1
      %p34 = por %p32, %p33
      %p35 = scmp.ne.s32.totalorder %s24, %s25
      %p36 = scmp.eq.s32.totalorder %s16, 0
      %p37 = por %p35, %p36
      %p38 = scmp.ne.s32.totalorder %s24, %s25
      %p39 = scmp.eq.s32.totalorder %s17, 1
      %p40 = por %p38, %p39
      %p42 = scmp.ne.s32.totalorder %s25, %s41
      %p43 = scmp.eq.s32.totalorder %s17, 0
      %p44 = por %p42, %p43
      %s46 = sadd.s32 %s45, 1
      %p49 = scmp.eq.s32.totalorder %s11, 1
      %p50 = scmp.ne.s32.totalorder %s45, %s47
      %p51 = scmp.eq.s32.totalorder %s11, 0
      %p52 = por %p50, %p51
      %p53 = scmp.ne.s32.totalorder %s45, %s47
      %p54 = scmp.eq.s32.totalorder %s16, 1
      %p55 = por %p53, %p54
      %p56 = scmp.ne.s32.totalorder %s47, %s48
      %p57 = scmp.eq.s32.totalorder %s16, 0
      %p58 = por %p56, %p57
      %p59 = scmp.ne.s32.totalorder %s47, %s48
      %p60 = scmp.eq.s32.totalorder %s17, 1
      %p61 = por %p59, %p60
      %p63 = scmp.ne.s32.totalorder %s48, %s62
      %p64 = scmp.eq.s32.totalorder %s17, 0
      %p65 = por %p63, %p64
      %s66 = ssub.s32 %s11, %s18
      %p67 = scmp.eq.s32.totalorder %s66, 0
      %s69 = sadd.s32 %s68, 1
      %s70 = scalar_select %p67, %s68, %s69
      %p73 = pneg %p67
      %p74 = scmp.eq.s32.totalorder %s11, 1
      %p75 = por %p73, %p74
      %p76 = scmp.ne.s32.totalorder %s68, %s71
      %p77 = scmp.eq.s32.totalorder %s11, 0
      %p78 = por %p76, %p77
      %p79 = scmp.ne.s32.totalorder %s68, %s71
      %p80 = scmp.eq.s32.totalorder %s16, 1
      %p81 = por %p79, %p80
      %p82 = scmp.ne.s32.totalorder %s71, %s72
      %p83 = scmp.eq.s32.totalorder %s16, 0
      %p84 = por %p82, %p83
      %p85 = scmp.ne.s32.totalorder %s71, %s72
      %p86 = scmp.eq.s32.totalorder %s17, 1
      %p87 = por %p85, %p86
      %p89 = scmp.ne.s32.totalorder %s72, %s88
      %p90 = scmp.eq.s32.totalorder %s17, 0
      %p91 = por %p89, %p90
      %p92 = scmp.le.s32.totalorder 1, %s11
      %p93 = scmp.lt.s32.totalorder %s11, 3
      %p94 = pnand %p92, %p93
      %p95 = pneg %p94
      // Predicated region
      $region9: #{tpu_custom_call.1} parent=5 // pred_check
        _
      $region10: #{tpu_custom_call.1} parent=5 // pred_check_branch
        %97 = sbr.rel (%p94) target = $region12
      $region11: #{tpu_custom_call.1} parent=5 // pred_region
        %s98 = ssub.s32 %s11, 1
        // Predicated region
        $region13: #{tpu_custom_call.1} parent=11 // pred_check
          %p99 = pneg %p58
        $region14: #{tpu_custom_call.1} parent=11 // pred_check_branch
          %101 = sbr.rel (%p99) target = $region16
        $region15: #{tpu_custom_call.1} parent=11 // pred_region
          _
        $region16: #{tpu_custom_call.1} parent=11 // pred_fallthru
          _
      $region12: #{tpu_custom_call.1} parent=5 // pred_fallthru
        _
      %p102 = scmp.lt.s32.totalorder %s11, 2
      // Predicated region
      $region17: #{tpu_custom_call.1} parent=5 // pred_check
        %p103 = pneg %p102
      $region18: #{tpu_custom_call.1} parent=5 // pred_check_branch
        %105 = sbr.rel (%p103) target = $region20
      $region19: #{tpu_custom_call.1} parent=5 // pred_region
        // Predicated region
        $region21: #{tpu_custom_call.1} parent=19 // pred_check
          %p106 = pneg %p31
        $region22: #{tpu_custom_call.1} parent=19 // pred_check_branch
          %108 = sbr.rel (%p106) target = $region24
        $region23: #{tpu_custom_call.1} parent=19 // pred_region
          %p109 = scmp.lt.s32.totalorder %s11, 1
          %s110 = scalar_select %p109, %s11, 1
          %s111 = smul.addr %s110, 10
          %s112 = smul.addr %s111, 8
          %s113 = scalar_lea.vmem %s0, %s112
        $region24: #{tpu_custom_call.1} parent=19 // pred_fallthru
          _
      $region20: #{tpu_custom_call.1} parent=5 // pred_fallthru
        _
      %p114 = scmp.le.s32.totalorder 1, %s11
      %p115 = scmp.lt.s32.totalorder %s11, 3
      %p116 = pnand %p114, %p115
      %p117 = pneg %p116
      // Predicated region
      $region25: #{tpu_custom_call.1} parent=5 // pred_check
        _
      $region26: #{tpu_custom_call.1} parent=5 // pred_check_branch
        %119 = sbr.rel (%p116) target = $region28
      $region27: #{tpu_custom_call.1} parent=5 // pred_region
        %s120 = ssub.s32 %s11, 1
        %p121 = scmp.lt.s32.totalorder %s16, 1
        %s122 = scalar_select %p121, %s16, 1
        %s123 = smul.addr %s122, 10
        %s124 = smul.addr %s123, 8
        %s125 = scalar_lea.vmem %s0, %s124
        %p126 = pneg %p37
        %p127 = pneg %p34
        %p128 = pneg %p58
        %p129 = pneg %p55
        %p130 = pneg %p84
        %p131 = pneg %p81
        %s132 = sand.u32 %s71, 1
        %s133 = scalar_lea.sflag [#allocation3], %s132
        %s134 = sand.u32 %s71, 1
        %s135 = smul.addr %s134, 16
        %s136 = scalar_lea.vmem [#allocation2], %s135
        %p137 = scmp.lt.s32.totalorder %s16, 1
        %s138 = scalar_select %p137, %s16, 1
        %s139 = smul.addr %s138, 10
        %s140 = smul.addr %s139, 8
        %s141 = scalar_lea.vmem %s0, %s140
        %v142 = vld [vmem:[%s141] sm:$0xff]
        %v143 = vld [vmem:[%s141 + $0x8] sm:$0xff]
        %v144 = vld [vmem:[%s141 + $0x10] sm:$0xff]
        %v145 = vld [vmem:[%s141 + $0x18] sm:$0xff]
        %v146 = vld [vmem:[%s141 + $0x20] sm:$0xff]
        %v147 = vld [vmem:[%s141 + $0x28] sm:$0xff]
        %v148 = vld [vmem:[%s141 + $0x30] sm:$0xff]
        %v149 = vld [vmem:[%s141 + $0x38] sm:$0xff]
        %v150 = vld [vmem:[%s141 + $0x40] sm:$0xf]
        %v151 = vld [vmem:[%s141 + $0x48] sm:$0xf]
        %v152 = vld [vmem:[%s1] sm:$0xff]
        %vm153 = vcmask 293888
        %v155 = vsel %vm153, %v152, 0
        %vm157 = vcmask 1043456
        %v159 = vsel %vm157, %v150, 0
        %v162 = vsel %vm157, %v151, 0
        %164 = vmatpush.msra.mxu0 0.0
        %165 = vmatpush.msra.mxu0 0.0
        %166 = vmatpush.msra.mxu0 0.0
        %167 = vmatpush.msra.mxu0 0.0
        %168 = vmatpush.msra.mxu0 0.0
        %169 = vmatpush.msra.mxu0 0.0
        %170 = vmatpush.msra.mxu0 0.0
        %171 = vmatpush.msra.mxu0 0.0
        %172 = vmatpush.msra.mxu0 0.0
        %173 = vmatpush.msra.mxu0 0.0
        %174 = vmatpush.msra.mxu0 0.0
        %175 = vmatpush.msra.mxu0 %v159
        %176 = vmatpush.msra.mxu0 %v148
        %177 = vmatpush.msra.mxu0 %v146
        %178 = vmatpush.msra.mxu0 %v144
        %179 = vmatpush.msra.mxu0 %v142
        %180 = vmatmul.f32.gmra.mxu0 %v155
        %v181 = vpop.f32.mrf.mxu0
        %v182 = vadd.f32 0.0, %v181
        %183 = vdwg.mxu0
        %184 = vmatpush.msra.mxu0 0.0
        %185 = vmatpush.msra.mxu0 0.0
        %186 = vmatpush.msra.mxu0 0.0
        %187 = vmatpush.msra.mxu0 0.0
        %188 = vmatpush.msra.mxu0 0.0
        %189 = vmatpush.msra.mxu0 0.0
        %190 = vmatpush.msra.mxu0 0.0
        %191 = vmatpush.msra.mxu0 0.0
        %192 = vmatpush.msra.mxu0 0.0
        %193 = vmatpush.msra.mxu0 0.0
        %194 = vmatpush.msra.mxu0 0.0
        %195 = vmatpush.msra.mxu0 %v162
        %196 = vmatpush.msra.mxu0 %v149
        %197 = vmatpush.msra.mxu0 %v147
        %198 = vmatpush.msra.mxu0 %v145
        %199 = vmatpush.msra.mxu0 %v143
        %200 = vmatmul.f32.gmra.mxu0 %v155
        %v201 = vpop.f32.mrf.mxu0
        %v202 = vadd.f32 0.0, %v201
        %203 = vdwg.mxu0
        %v204 = vadd.f32 %v182, %v202
        %205 = vadd.xlane.f32.xlu0 %v204
        %v206 = vpop.xlane.xlu0 %205
        %v207 = vrcp.pop 256.0
        %v208 = vmul.f32 256.0, %v207
        %v209 = vsub.f32 1.0, %v208
        %v210 = vmul.f32 %v207, %v209
        %v211 = vadd.f32 %v207, %v210
        %vm212 = vweird.f32 %v207
        %v213 = vsel %vm212, %v207, %v211
        %v214 = vmul.f32 %v206, %v213
        %v215 = vsub.f32 %v182, %v214
        %v216 = vsub.f32 %v202, %v214
        %v217 = vmul.f32 %v215, %v215
        %v218 = vmul.f32 %v216, %v216
        %v219 = vadd.f32 %v217, %v218
        %220 = vadd.xlane.f32.xlu0 %v219
        %v221 = vpop.xlane.xlu0 %220
        %v222 = vmul.f32 %v221, %v213
        %v223 = vadd.f32 %v222, 1e-05
        %v224 = vrsqrt.pop %v223
        %v225 = vmul.f32 %v224, %v223
        %v226 = vmul.f32 %v225, %v224
        %v227 = vmul.f32 0.5, %v226
        %v228 = vsub.f32 1.5, %v227
        %v229 = vmul.f32 %v224, %v228
        %vm230 = vweird.f32 %v223
        %vm231 = vweird.f32 %v224
        %vm232 = vmor %vm230, %vm231
        %v233 = vsel %vm232, %v224, %v229
        %v234 = vmul.f32 %v215, %v233
        %v235 = vmul.f32 %v216, %v233
        %v236 = vmax.f32 %v234, 0.0
        %v237 = vmax.f32 %v235, 0.0
        %238 = vst [vmem:[%s136] sm:$0xff] %v236
        %239 = vst [vmem:[%s136 + $0x8] sm:$0xff] %v237
        %s240 = sand.u32 %s71, 1
        %s241 = scalar_lea.sflag [#allocation3], %s240
        %s242 = sand.u32 %s71, 1
        %s243 = smul.addr %s242, 16
        %s244 = scalar_lea.vmem [#allocation2], %s243
        // Predicated region
        $region29: #{tpu_custom_call.1} parent=27 // pred_check
          %p245 = pneg %p81
        $region30: #{tpu_custom_call.1} parent=27 // pred_check_branch
          %247 = sbr.rel (%p245) target = $region32
        $region31: #{tpu_custom_call.1} parent=27 // pred_region
          %249 = vsyncadd %s241, 0
          %s250 = smul.addr %s16, 2
          %s251 = smul.addr %s250, 8
          %s252 = scalar_lea.hbm %s2, %s251
          %s254 = sshll.u32 %s244, 4
          %s255 = int_to_ptr.vmem [resolvable:$true] %s254
          %s256 = sshll.u32 %s252, 4
          %s257 = int_to_ptr.hbm [resolvable:$true] %s256
          %259 = dma.vmem_to_hbm [thread:$0]  %s255, 256, %s257, %s241
        $region32: #{tpu_custom_call.1} parent=27 // pred_fallthru
          _
      $region28: #{tpu_custom_call.1} parent=5 // pred_fallthru
        _
      %p260 = scmp.le.s32.totalorder 2, %s11
      // Predicated region
      $region33: #{tpu_custom_call.1} parent=5 // pred_check
        %p261 = pneg %p260
      $region34: #{tpu_custom_call.1} parent=5 // pred_check_branch
        %263 = sbr.rel (%p261) target = $region36
      $region35: #{tpu_custom_call.1} parent=5 // pred_region
        %s264 = ssub.s32 %s11, 2
        // Predicated region
        $region37: #{tpu_custom_call.1} parent=35 // pred_check
          %p265 = pneg %p87
        $region38: #{tpu_custom_call.1} parent=35 // pred_check_branch
          %267 = sbr.rel (%p265) target = $region40
        $region39: #{tpu_custom_call.1} parent=35 // pred_region
          %s268 = sand.u32 %s72, 1
          %s269 = scalar_lea.sflag [#allocation3], %s268
          %s270 = sand.u32 %s72, 1
          %s271 = smul.addr %s270, 16
          %s272 = scalar_lea.vmem [#allocation2], %s271
          %274 = dma.done %s269, 256
        $region40: #{tpu_custom_call.1} parent=35 // pred_fallthru
          _
      $region36: #{tpu_custom_call.1} parent=5 // pred_fallthru
        _
    $region6: #{tpu_custom_call.1} parent=1 // loop_footer
      %s15 = sadd.s32 1, %s11
    $region7: #{tpu_custom_call.1} parent=1 // loop_footer_branch
      %10 = sbr.rel target = $region3
    $region8: #{tpu_custom_call.1} parent=1 // loop_exit
      _
    %275 = vsyncpa [#allocation3], 1
    %s276 = scalar_lea.sflag [#allocation3], 1
    %277 = vsyncpa %s276, 1

</llo_original>
